<compile_context>
chip_gen: v6e
topology: v6e:2x2x1
jax: 0.10.0
libtpu: 0.0.40
codegen_flags: <defaults>
</compile_context>

<pallas_src>
import math
from functools import partial

import jax
import jax.numpy as jnp
from jax.experimental import pallas as pl
from jax.experimental.pallas import tpu as pltpu


# --------------------------------- helpers -------------------------------------------
def _round_up(n, m):
    return ((n + m - 1) // m) * m


def _chip_kind():
    """Coarse TPU generation tag: 'v5', 'v6' (default), or 'v7'."""
    try:
        kind = jax.devices()[0].device_kind.lower()
    except Exception:
        kind = ""
    if "v5" in kind:
        return "v5"
    if "v7" in kind:
        return "v7"
    return "v6"


# ----------------------------------- kernel -------------------------------------------
def mlp_kernel(x_ref, w1_ref, b1_ref, w2_ref, b2_ref, o_ref, acc_ref, *, gelu_dtype):
    # x_ref:  (TM, Din_p)     f32   row tile of tokens (cast to bf16 in-kernel)
    # w1_ref: (Din_p, Dh_blk) bf16  hidden-dim slab (resident when Dh fits)
    # b1_ref: (1, Dh_blk)     f32
    # w2_ref: (Dh_blk, Dout_p) bf16
    # b2_ref: (1, Dout_p)     f32   (resident)
    # o_ref:  (TM, Dout_p)    f32
    # acc_ref:(TM, Dout_p)    f32   fc2 accumulator across hidden-dim chunks
    k = pl.program_id(1)

    @pl.when(k == 0)
    def _():
        acc_ref[...] = jnp.zeros_like(acc_ref)

    # fc1: cast x tile to bf16 on the VPU (free), bf16 MXU matmul, f32 accumulate
    x = x_ref[...].astype(w1_ref.dtype)
    h = jnp.dot(x, w1_ref[...], preferred_element_type=jnp.float32)
    h = (h + b1_ref[...]).astype(gelu_dtype)

    # GELU (tanh approximation); bf16 on v6e/v7x (bf16 VPU/EUP), f32 on v5e
    c = 0.7978845608028654  # sqrt(2/pi)
    g = 0.5 * h * (1.0 + jnp.tanh(c * (h + 0.044715 * h * h * h)))
    # dropout p=0.0 -> identity

    # fc2 partial: bf16 MXU matmul, accumulate f32 across hidden-dim chunks
    acc_ref[...] += jnp.dot(g.astype(w2_ref.dtype), w2_ref[...],
                            preferred_element_type=jnp.float32)

    @pl.when(k == pl.num_programs(1) - 1)
    def _():
        o_ref[...] = (acc_ref[...] + b2_ref[...]).astype(o_ref.dtype)
        # dropout p=0.0 -> identity


# ------------------------------ weight preparation -------------------------------------
def prepare_params(params, *, chip=None):
    """Pad + cast weights once (call once, reuse across forward calls)."""
    chip = chip or _chip_kind()
    w1, b1, w2, b2 = params["w1"], params["b1"], params["w2"], params["b2"]
    d_in, d_h = w1.shape
    d_out = w2.shape[1]

    # MXU N-dim (d_h, d_out) alignment: 256 on the 256x256-MXU generations, 128 on v5e.
    n_align = 128 if chip == "v5" else 256
    k_align = 128

    d_in_p = _round_up(d_in, k_align)
    d_h_p = _round_up(d_h, n_align)
    d_out_p = _round_up(d_out, n_align)

    # Keep bf16 weights fully resident in VMEM if they fit the budget; otherwise chunk
    # the hidden dim (mainly a v7x concern: 64 MiB VMEM per TensorCore).
    weight_budget = (20 << 20) if chip == "v7" else (56 << 20)
    resident_bytes = (d_in_p * d_h_p + d_h_p * d_out_p) * 2
    if resident_bytes <= weight_budget:
        dh_blk = d_h_p
    else:
        # chunked weight slabs are double-buffered -> size them to half the budget
        max_dh = weight_budget // ((d_in_p + d_out_p) * 2 * 2)
        dh_blk = max(n_align, (max_dh // n_align) * n_align)
        d_h_p = _round_up(d_h, dh_blk)

    w1_p = jnp.pad(w1, ((0, d_in_p - d_in), (0, d_h_p - d_h))).astype(jnp.bfloat16)
    b1_p = jnp.pad(b1, (0, d_h_p - d_h)).reshape(1, d_h_p).astype(jnp.float32)
    w2_p = jnp.pad(w2, ((0, d_h_p - d_h), (0, d_out_p - d_out))).astype(jnp.bfloat16)
    b2_p = jnp.pad(b2, (0, d_out_p - d_out)).reshape(1, d_out_p).astype(jnp.float32)

    meta = dict(chip=chip, d_in=d_in, d_h=d_h, d_out=d_out,
                d_in_p=d_in_p, d_h_p=d_h_p, d_out_p=d_out_p, dh_blk=dh_blk)
    return dict(w1=w1_p, b1=b1_p, w2=w2_p, b2=b2_p, meta=meta)


# ----------------------------------- wrapper -------------------------------------------
def mlp_forward(x, prepared, *, block_rows=None):
    """x: (..., in_features) f32.  prepared: output of prepare_params()."""
    meta = prepared["meta"]
    chip = meta["chip"]
    d_in, d_out = meta["d_in"], meta["d_out"]
    d_in_p, d_h_p = meta["d_in_p"], meta["d_h_p"]
    d_out_p, dh_blk = meta["d_out_p"], meta["dh_blk"]

    if block_rows is None:
        # big tiles amortize the ~0.35us/step overhead; v7x has half the VMEM
        block_rows = 256 if chip == "v7" else 512

    lead = x.shape[:-1]
    m = math.prod(lead) if lead else 1
    xm = x.reshape(m, d_in)

    # row-tile granularity: 128 for large M (full MXU M dim), 16 minimum (bf16 sublane tile)
    grain = 128 if m >= 128 else 16
    tm = max(grain, min(_round_up(m, grain), max(grain, (block_rows // grain) * grain)))
    m_p = _round_up(m, tm)

    # v7x: two TensorCores share the ("parallel") row grid -> ensure >= 2 row tiles
    if chip == "v7":
        while m_p // tm < 2 and tm > grain:
            tm = max(grain, _round_up(tm // 2, grain))
            m_p = _round_up(m, tm)

    # x stays f32 (kernel casts to bf16 on the VPU); only zero-pad if needed
    if (m_p, d_in_p) != (m, d_in):
        xm = jnp.pad(xm, ((0, m_p - m), (0, d_in_p - d_in)))
    xm = xm.astype(jnp.float32)

    dh_chunks = d_h_p // dh_blk
    grid = (m_p // tm, dh_chunks)

    # constant-index (resident) operands never re-DMA -> single buffer
    if dh_chunks == 1:
        w1_spec = pl.BlockSpec((d_in_p, dh_blk), lambda i, k: (0, k),
                               pipeline_mode=pl.Buffered(1))
        b1_spec = pl.BlockSpec((1, dh_blk), lambda i, k: (0, k),
                               pipeline_mode=pl.Buffered(1))
        w2_spec = pl.BlockSpec((dh_blk, d_out_p), lambda i, k: (k, 0),
                               pipeline_mode=pl.Buffered(1))
    else:
        w1_spec = pl.BlockSpec((d_in_p, dh_blk), lambda i, k: (0, k))
        b1_spec = pl.BlockSpec((1, dh_blk), lambda i, k: (0, k))
        w2_spec = pl.BlockSpec((dh_blk, d_out_p), lambda i, k: (k, 0))
    b2_spec = pl.BlockSpec((1, d_out_p), lambda i, k: (0, 0),
                           pipeline_mode=pl.Buffered(1))

    # explicit VMEM budget (double-buffered activations, weight slabs, scratch) + headroom
    n_wbuf = 1 if dh_chunks == 1 else 2
    vmem_bytes = (
        tm * d_in_p * 4 * 2              # x tile (f32), double-buffered
        + tm * d_out_p * 4 * 2           # out tile (f32), double-buffered
        + d_in_p * dh_blk * 2 * n_wbuf   # w1 slab (bf16)
        + dh_blk * d_out_p * 2 * n_wbuf  # w2 slab (bf16)
        + dh_blk * 4 * n_wbuf            # b1
        + d_out_p * 4                    # b2
        + tm * d_out_p * 4               # f32 accumulator scratch
        + tm * dh_blk * 6                # f32 + bf16 intermediate activations
    )
    vmem_cap = (60 << 20) if chip == "v7" else (120 << 20)
    vmem_limit = int(min(max(2 * vmem_bytes + (2 << 20), 16 << 20), vmem_cap))

    gelu_dtype = jnp.float32 if chip == "v5" else jnp.bfloat16

    out = pl.pallas_call(
        partial(mlp_kernel, gelu_dtype=gelu_dtype),
        out_shape=jax.ShapeDtypeStruct((m_p, d_out_p), jnp.float32),
        grid=grid,
        in_specs=[
            pl.BlockSpec((tm, d_in_p), lambda i, k: (i, 0)),   # row tile of x
            w1_spec, b1_spec, w2_spec, b2_spec,
        ],
        out_specs=pl.BlockSpec((tm, d_out_p), lambda i, k: (i, 0)),
        scratch_shapes=[pltpu.VMEM((tm, d_out_p), jnp.float32)],
        compiler_params=pltpu.CompilerParams(
            dimension_semantics=("parallel", "arbitrary"),
            vmem_limit_bytes=vmem_limit),
    )(xm, prepared["w1"], prepared["b1"], prepared["w2"], prepared["b2"])

    return out[:m, :d_out].reshape(*lead, d_out)


# --------------------------- parameters (deterministic) -------------------------------
def make_params(key, in_features, hidden_features, out_features):
    # Linear weights stored as (fan_in, fan_out); PyTorch nn.Linear stores (out, in)
    # and computes x @ W.T, so this is the transposed layout of the same matrices.
    k1, k2, k3, k4 = jax.random.split(key, 4)
    lim1 = 1.0 / math.sqrt(in_features)
    lim2 = 1.0 / math.sqrt(hidden_features)
    w1 = jax.random.uniform(k1, (in_features, hidden_features), jnp.float32, -lim1, lim1)
    b1 = jax.random.uniform(k2, (hidden_features,), jnp.float32, -lim1, lim1)
    w2 = jax.random.uniform(k3, (hidden_features, out_features), jnp.float32, -lim2, lim2)
    b2 = jax.random.uniform(k4, (out_features,), jnp.float32, -lim2, lim2)
    return dict(w1=w1, b1=b1, w2=w2, b2=b2)


# ------------------------------- pure-JAX reference ------------------------------------
def ref_forward(x, params):
    h = x @ params["w1"] + params["b1"]
    h = jax.nn.gelu(h, approximate=False)     # exact erf GELU == nn.GELU() default
    # dropout p=0.0 -> identity
    return h @ params["w2"] + params["b2"]


if __name__ == "__main__":
    key = jax.random.PRNGKey(0)
    k_x, k_p = jax.random.split(key)

    # small shapes implied by the module: batch=2, seq=16, in_features=32, hidden=64
    B, S, D_IN, D_HID = 2, 16, 32, 64
    x = jax.random.normal(k_x, (B, S, D_IN), jnp.float32)
    params = make_params(k_p, D_IN, D_HID, D_IN)

    # pad/cast the weights once; reuse across calls (no per-call weight traffic)
    prepared = prepare_params(params)

    # block_rows=16 -> grid row axis has 2 steps so the pipelined/parallel grid and
    # the accumulator init/finalize paths are exercised
    out = jax.block_until_ready(mlp_forward(x, prepared, block_rows=16))
    ref = jax.block_until_ready(ref_forward(x, params))

    assert out.shape == ref.shape, (out.shape, ref.shape)
    err = float(jnp.max(jnp.abs(out - ref)))
    # tolerance covers bf16 matmul operands / bf16 GELU + tanh-approx vs f32/erf reference
    assert err < 5e-2, err

    print("KERNEL_OK")
</pallas_src>

<mosaic_0001>
module attributes {stable_mosaic.version = 11 : i64} {
  func.func @mlp_kernel(%arg0: i32, %arg1: i32, %arg2: memref<16x128xf32, #tpu.memory_space<vmem>>, %arg3: memref<128x256xbf16, #tpu.memory_space<vmem>>, %arg4: memref<1x256xf32, #tpu.memory_space<vmem>>, %arg5: memref<256x256xbf16, #tpu.memory_space<vmem>>, %arg6: memref<1x256xf32, #tpu.memory_space<vmem>>, %arg7: memref<16x256xf32, #tpu.memory_space<vmem>>, %arg8: memref<16x256xf32, #tpu.memory_space<vmem>>) attributes {dimension_semantics = [#tpu.dimension_semantics<parallel>, #tpu.dimension_semantics<arbitrary>], iteration_bounds = array<i64: 2, 1>, scalar_prefetch = 0 : i64, scratch_operands = 1 : i64, tpu.core_type = #tpu.core_type<tc>, window_params = [{transform_indices = @transform_0, window_bounds = array<i64: 16, 128>}, {pipeline_mode = #tpu.pipeline_mode<synchronous>, transform_indices = @transform_1, window_bounds = array<i64: 128, 256>}, {pipeline_mode = #tpu.pipeline_mode<synchronous>, transform_indices = @transform_2, window_bounds = array<i64: 1, 256>}, {pipeline_mode = #tpu.pipeline_mode<synchronous>, transform_indices = @transform_3, window_bounds = array<i64: 256, 256>}, {pipeline_mode = #tpu.pipeline_mode<synchronous>, transform_indices = @transform_4, window_bounds = array<i64: 1, 256>}, {transform_indices = @transform_5, window_bounds = array<i64: 16, 256>}]} {
    %c0_i32 = arith.constant 0 : i32
    %0 = arith.cmpi eq, %arg1, %c0_i32 : i32
    %1 = arith.extui %0 : i1 to i32
    %c0_i32_0 = arith.constant 0 : i32
    %2 = arith.cmpi ne, %1, %c0_i32_0 : i32
    scf.if %2 {
      %cst_19 = arith.constant 0.000000e+00 : f32
      %32 = vector.broadcast %cst_19 : f32 to vector<16x256xf32>
      %c0_20 = arith.constant 0 : index
      %c0_21 = arith.constant 0 : index
      %33 = vector.load %arg8[%c0_20, %c0_21] : memref<16x256xf32, #tpu.memory_space<vmem>>, vector<16x256xf32>
      tpu.vector_store %arg8[%c0_20, %c0_21], %32 {strides = array<i32>} : memref<16x256xf32, #tpu.memory_space<vmem>>, vector<16x256xf32>,
    } else {
    }
    %c0 = arith.constant 0 : index
    %c0_1 = arith.constant 0 : index
    %3 = vector.load %arg2[%c0, %c0_1] : memref<16x128xf32, #tpu.memory_space<vmem>>, vector<16x128xf32>
    %4 = arith.truncf %3 : vector<16x128xf32> to vector<16x128xbf16>
    %c0_2 = arith.constant 0 : index
    %c0_3 = arith.constant 0 : index
    %5 = vector.load %arg3[%c0_2, %c0_3] : memref<128x256xbf16, #tpu.memory_space<vmem>>, vector<128x256xbf16>
    %cst = arith.constant dense<0.000000e+00> : vector<16x256xf32>
    %6 = tpu.matmul %4, %5, %cst {dimension_numbers = #tpu.dot_dimension_numbers<[1], [0], [0], [1], [0, 0, 1, 1], [], []>} : vector<16x128xbf16>, vector<128x256xbf16>, vector<16x256xf32> -> vector<16x256xf32>
    %c0_4 = arith.constant 0 : index
    %c0_5 = arith.constant 0 : index
    %7 = vector.load %arg4[%c0_4, %c0_5] : memref<1x256xf32, #tpu.memory_space<vmem>>, vector<1x256xf32>
    %8 = vector.broadcast %7 : vector<1x256xf32> to vector<16x256xf32>
    %9 = arith.addf %6, %8 : vector<16x256xf32>
    %10 = arith.truncf %9 : vector<16x256xf32> to vector<16x256xbf16>
    %cst_6 = arith.constant 5.000000e-01 : bf16
    %11 = vector.broadcast %cst_6 : bf16 to vector<16x256xbf16>
    %12 = arith.mulf %11, %10 : vector<16x256xbf16>
    %cst_7 = arith.constant 4.467770e-02 : bf16
    %13 = vector.broadcast %cst_7 : bf16 to vector<16x256xbf16>
    %14 = arith.mulf %13, %10 : vector<16x256xbf16>
    %15 = arith.mulf %14, %10 : vector<16x256xbf16>
    %16 = arith.mulf %15, %10 : vector<16x256xbf16>
    %17 = arith.addf %10, %16 : vector<16x256xbf16>
    %cst_8 = arith.constant 7.968750e-01 : bf16
    %18 = vector.broadcast %cst_8 : bf16 to vector<16x256xbf16>
    %19 = arith.mulf %18, %17 : vector<16x256xbf16>
    %20 = math.tanh %19 : vector<16x256xbf16>
    %cst_9 = arith.constant 1.000000e+00 : bf16
    %21 = vector.broadcast %cst_9 : bf16 to vector<16x256xbf16>
    %22 = arith.addf %21, %20 : vector<16x256xbf16>
    %23 = arith.mulf %12, %22 : vector<16x256xbf16>
    %c0_10 = arith.constant 0 : index
    %c0_11 = arith.constant 0 : index
    %24 = vector.load %arg8[%c0_10, %c0_11] : memref<16x256xf32, #tpu.memory_space<vmem>>, vector<16x256xf32>
    %c0_12 = arith.constant 0 : index
    %c0_13 = arith.constant 0 : index
    %25 = vector.load %arg5[%c0_12, %c0_13] : memref<256x256xbf16, #tpu.memory_space<vmem>>, vector<256x256xbf16>
    %cst_14 = arith.constant dense<0.000000e+00> : vector<16x256xf32>
    %26 = tpu.matmul %23, %25, %cst_14 {dimension_numbers = #tpu.dot_dimension_numbers<[1], [0], [0], [1], [0, 0, 1, 1], [], []>} : vector<16x256xbf16>, vector<256x256xbf16>, vector<16x256xf32> -> vector<16x256xf32>
    %27 = arith.addf %24, %26 : vector<16x256xf32>
    %c0_15 = arith.constant 0 : index
    %c0_16 = arith.constant 0 : index
    %28 = vector.load %arg8[%c0_15, %c0_16] : memref<16x256xf32, #tpu.memory_space<vmem>>, vector<16x256xf32>
    tpu.vector_store %arg8[%c0_15, %c0_16], %27 {strides = array<i32>} : memref<16x256xf32, #tpu.memory_space<vmem>>, vector<16x256xf32>,
    %c0_i32_17 = arith.constant 0 : i32
    %29 = arith.cmpi eq, %arg1, %c0_i32_17 : i32
    %30 = arith.extui %29 : i1 to i32
    %c0_i32_18 = arith.constant 0 : i32
    %31 = arith.cmpi ne, %30, %c0_i32_18 : i32
    scf.if %31 {
      %c0_19 = arith.constant 0 : index
      %c0_20 = arith.constant 0 : index
      %32 = vector.load %arg8[%c0_19, %c0_20] : memref<16x256xf32, #tpu.memory_space<vmem>>, vector<16x256xf32>
      %c0_21 = arith.constant 0 : index
      %c0_22 = arith.constant 0 : index
      %33 = vector.load %arg6[%c0_21, %c0_22] : memref<1x256xf32, #tpu.memory_space<vmem>>, vector<1x256xf32>
      %34 = vector.broadcast %33 : vector<1x256xf32> to vector<16x256xf32>
      %35 = arith.addf %32, %34 : vector<16x256xf32>
      %c0_23 = arith.constant 0 : index
      %c0_24 = arith.constant 0 : index
      %36 = vector.load %arg7[%c0_23, %c0_24] : memref<16x256xf32, #tpu.memory_space<vmem>>, vector<16x256xf32>
      tpu.vector_store %arg7[%c0_23, %c0_24], %35 {strides = array<i32>} : memref<16x256xf32, #tpu.memory_space<vmem>>, vector<16x256xf32>,
    } else {
    }
    return
  }
  func.func @transform_0(%arg0: i32, %arg1: i32) -> (i32, i32) {
    %c0_i32 = arith.constant 0 : i32
    %c0_i32_0 = arith.constant 0 : i32
    return %arg0, %c0_i32 : i32, i32
  }
  func.func @transform_1(%arg0: i32, %arg1: i32) -> (i32, i32) {
    %c0_i32 = arith.constant 0 : i32
    %c0_i32_0 = arith.constant 0 : i32
    return %c0_i32, %arg1 : i32, i32
  }
  func.func @transform_2(%arg0: i32, %arg1: i32) -> (i32, i32) {
    %c0_i32 = arith.constant 0 : i32
    %c0_i32_0 = arith.constant 0 : i32
    return %c0_i32, %arg1 : i32, i32
  }
  func.func @transform_3(%arg0: i32, %arg1: i32) -> (i32, i32) {
    %c0_i32 = arith.constant 0 : i32
    %c0_i32_0 = arith.constant 0 : i32
    return %arg1, %c0_i32 : i32, i32
  }
  func.func @transform_4(%arg0: i32, %arg1: i32) -> (i32, i32) {
    %c0_i32 = arith.constant 0 : i32
    %c0_i32_0 = arith.constant 0 : i32
    %c0_i32_1 = arith.constant 0 : i32
    return %c0_i32, %c0_i32_0 : i32, i32
  }
  func.func @transform_5(%arg0: i32, %arg1: i32) -> (i32, i32) {
    %c0_i32 = arith.constant 0 : i32
    %c0_i32_0 = arith.constant 0 : i32
    return %arg0, %c0_i32 : i32, i32
  }
}

</mosaic_0001>

<llo_original>
// kernel: tpu_custom_call.1
$region0: #{tpu_custom_call.1}
  #allocation0 [shape = 'u32[]', space=smem, size = 0x4, offset = 0x4, fixed_abs, tag = 'smem constant byte address 0x4 - core index']
  #allocation1 [shape = 'u32[144,128]{1,0:T(1,128)}', space=vmem, size = 0x12000, scoped, tag = 'internal scratch']
  #allocation2 [shape = 'f32[16,256]{1,0:T(8,128)}', space=vmem, size = 0x4000, scoped, tag = 'scratch operand']
  %s0 = inlined_call_operand.hbm [shape: f32[32,128], index: 0, kind: input, shape index: {}]
  %s1 = inlined_call_operand.hbm [shape: bf16[128,256], index: 1, kind: input, shape index: {}]
  %s2 = inlined_call_operand.vmem [shape: f32[1,256], index: 2, kind: input, shape index: {}]
  %s3 = inlined_call_operand.hbm [shape: bf16[256,256], index: 3, kind: input, shape index: {}]
  %s4 = inlined_call_operand.vmem [shape: f32[1,256], index: 4, kind: input, shape index: {}]
  %s5 = inlined_call_operand.hbm [shape: f32[32,256], index: 5, kind: output, shape index: {}]
  %s6 = sld [smem:[#allocation0]]
  $region73: #{tpu_custom_call.1} parent=0
    _
  %s8 = ssub.s32 1, %s6
  %s9 = scalar_select 0, %s8, %s6
  $region1: #{tpu_custom_call.1} parent=0
    #allocation3 [shape = 'u8[16384]{0}', space=vmem, size = 0x4000, scoped, tag = 'input window, operand 0']
    #allocation4 [shape = 's32[2]{0}', space=sflag, size = 0x8, scoped, tag = 'scoped memory for tpu_custom_call.1']
    #allocation5 [shape = 's32[2]{0}', space=sflag, size = 0x8, scoped, tag = 'scoped memory for tpu_custom_call.1']
    #allocation6 [shape = 'u8[65536]{0}', space=vmem, size = 0x10000, scoped, tag = 'input window, operand 1, single buffered']
    #allocation7 [shape = 's32[1]{0}', space=sflag, size = 0x4, scoped, tag = 'scoped memory for tpu_custom_call.1']
    #allocation8 [shape = 'u8[131072]{0}', space=vmem, size = 0x20000, scoped, tag = 'input window, operand 3, single buffered']
    #allocation9 [shape = 'u8[32768]{0}', space=vmem, size = 0x8000, scoped, tag = 'output window, operand 0']
    %10 = vsyncpa [#allocation4], 0
    %s11 = scalar_lea.sflag [#allocation4], 1
    %12 = vsyncpa %s11, 0
    %13 = vsyncpa [#allocation7], 0
    %14 = vsyncpa [#allocation5], 0
    %s15 = scalar_lea.sflag [#allocation5], 1
    %16 = vsyncpa %s15, 0
    loop: start=0, step=1, limit=4
    $region2: #{tpu_custom_call.1} parent=1 // loop_pre_header
      _
    $region3: #{tpu_custom_call.1} parent=1 // loop_header
      %s18 = sphi 0, %s22
      %p19 = scmp.ge.s32.totalorder %s18, 4
      %s25 = sphi 0, %s37
      %s26 = sphi 0, %s33
      %s27 = sphi 0, %s25
      %s28 = sphi 0, %s26
      %s29 = sphi 0, %s27
      %s30 = sphi 0, %s28
      %s40 = sphi 0, %s42
      %s43 = sphi 0, %s40
      %s44 = sphi 0, %s43
      %s60 = sphi 0, %s44
      %s66 = sphi 0, %s68
      %s69 = sphi 0, %s66
      %s70 = sphi 0, %s69
      %s86 = sphi 0, %s70
      %s92 = sphi 0, %s94
      %s95 = sphi 0, %s92
      %s96 = sphi 0, %s95
      %s112 = sphi 0, %s96
      %s118 = sphi 0, %s120
      %s121 = sphi 0, %s118
      %s122 = sphi 0, %s121
      %s138 = sphi 0, %s122
      %s142 = sphi 0, %s142
      %s144 = sphi 0, %s142
      %s145 = sphi 0, %s144
      %s159 = sphi 0, %s145
      %s165 = sphi 0, %s167
      %s168 = sphi 0, %s165
      %s169 = sphi 0, %s168
      %s185 = sphi 0, %s169
    $region4: #{tpu_custom_call.1} parent=1 // loop_header_branch
      %21 = sbr.rel (%p19) target = $region8
    $region5: #{tpu_custom_call.1} parent=1 // loop_body
      %s23 = ssub.s32 %s18, 1
      %s24 = ssub.s32 %s18, 2
      %s31 = sadd.s32 1, %s26
      %p32 = scmp.ge.s32.totalorder %s31, 1
      %s33 = scalar_select %p32, 0, %s31
      %s34 = sadd.s32 1, %s25
      %s35 = scalar_select %p32, %s34, %s25
      %p36 = scmp.ge.s32.totalorder %s35, 2
      %s37 = scalar_select %p36, 0, %s35
      %s38 = ssub.s32 %s25, %s37
      %p39 = scmp.eq.s32.totalorder %s38, 0
      %s41 = sadd.s32 %s40, 1
      %s42 = scalar_select %p39, %s40, %s41
      %p45 = pneg %p39
      %p46 = scmp.eq.s32.totalorder %s18, 1
      %p47 = por %p45, %p46
      %p48 = scmp.ne.s32.totalorder %s40, %s43
      %p49 = scmp.eq.s32.totalorder %s18, 0
      %p50 = por %p48, %p49
      %p51 = scmp.ne.s32.totalorder %s40, %s43
      %p52 = scmp.eq.s32.totalorder %s23, 1
      %p53 = por %p51, %p52
      %p54 = scmp.ne.s32.totalorder %s43, %s44
      %p55 = scmp.eq.s32.totalorder %s23, 0
      %p56 = por %p54, %p55
      %p57 = scmp.ne.s32.totalorder %s43, %s44
      %p58 = scmp.eq.s32.totalorder %s24, 1
      %p59 = por %p57, %p58
      %p61 = scmp.ne.s32.totalorder %s44, %s60
      %p62 = scmp.eq.s32.totalorder %s24, 0
      %p63 = por %p61, %p62
      %s64 = ssub.s32 %s26, %s33
      %p65 = scmp.eq.s32.totalorder %s64, 0
      %s67 = sadd.s32 %s66, 1
      %s68 = scalar_select %p65, %s66, %s67
      %p71 = pneg %p65
      %p72 = scmp.eq.s32.totalorder %s18, 1
      %p73 = por %p71, %p72
      %p74 = scmp.ne.s32.totalorder %s66, %s69
      %p75 = scmp.eq.s32.totalorder %s18, 0
      %p76 = por %p74, %p75
      %p77 = scmp.ne.s32.totalorder %s66, %s69
      %p78 = scmp.eq.s32.totalorder %s23, 1
      %p79 = por %p77, %p78
      %p80 = scmp.ne.s32.totalorder %s69, %s70
      %p81 = scmp.eq.s32.totalorder %s23, 0
      %p82 = por %p80, %p81
      %p83 = scmp.ne.s32.totalorder %s69, %s70
      %p84 = scmp.eq.s32.totalorder %s24, 1
      %p85 = por %p83, %p84
      %p87 = scmp.ne.s32.totalorder %s70, %s86
      %p88 = scmp.eq.s32.totalorder %s24, 0
      %p89 = por %p87, %p88
      %s90 = ssub.s32 %s26, %s33
      %p91 = scmp.eq.s32.totalorder %s90, 0
      %s93 = sadd.s32 %s92, 1
      %s94 = scalar_select %p91, %s92, %s93
      %p97 = pneg %p91
      %p98 = scmp.eq.s32.totalorder %s18, 1
      %p99 = por %p97, %p98
      %p100 = scmp.ne.s32.totalorder %s92, %s95
      %p101 = scmp.eq.s32.totalorder %s18, 0
      %p102 = por %p100, %p101
      %p103 = scmp.ne.s32.totalorder %s92, %s95
      %p104 = scmp.eq.s32.totalorder %s23, 1
      %p105 = por %p103, %p104
      %p106 = scmp.ne.s32.totalorder %s95, %s96
      %p107 = scmp.eq.s32.totalorder %s23, 0
      %p108 = por %p106, %p107
      %p109 = scmp.ne.s32.totalorder %s95, %s96
      %p110 = scmp.eq.s32.totalorder %s24, 1
      %p111 = por %p109, %p110
      %p113 = scmp.ne.s32.totalorder %s96, %s112
      %p114 = scmp.eq.s32.totalorder %s24, 0
      %p115 = por %p113, %p114
      %s116 = ssub.s32 %s26, %s33
      %p117 = scmp.eq.s32.totalorder %s116, 0
      %s119 = sadd.s32 %s118, 1
      %s120 = scalar_select %p117, %s118, %s119
      %p123 = pneg %p117
      %p124 = scmp.eq.s32.totalorder %s18, 1
      %p125 = por %p123, %p124
      %p126 = scmp.ne.s32.totalorder %s118, %s121
      %p127 = scmp.eq.s32.totalorder %s18, 0
      %p128 = por %p126, %p127
      %p129 = scmp.ne.s32.totalorder %s118, %s121
      %p130 = scmp.eq.s32.totalorder %s23, 1
      %p131 = por %p129, %p130
      %p132 = scmp.ne.s32.totalorder %s121, %s122
      %p133 = scmp.eq.s32.totalorder %s23, 0
      %p134 = por %p132, %p133
      %p135 = scmp.ne.s32.totalorder %s121, %s122
      %p136 = scmp.eq.s32.totalorder %s24, 1
      %p137 = por %p135, %p136
      %p139 = scmp.ne.s32.totalorder %s122, %s138
      %p140 = scmp.eq.s32.totalorder %s24, 0
      %p141 = por %p139, %p140
      %s143 = sadd.s32 %s142, 1
      %p146 = scmp.eq.s32.totalorder %s18, 1
      %p147 = scmp.ne.s32.totalorder %s142, %s144
      %p148 = scmp.eq.s32.totalorder %s18, 0
      %p149 = por %p147, %p148
      %p150 = scmp.ne.s32.totalorder %s142, %s144
      %p151 = scmp.eq.s32.totalorder %s23, 1
      %p152 = por %p150, %p151
      %p153 = scmp.ne.s32.totalorder %s144, %s145
      %p154 = scmp.eq.s32.totalorder %s23, 0
      %p155 = por %p153, %p154
      %p156 = scmp.ne.s32.totalorder %s144, %s145
      %p157 = scmp.eq.s32.totalorder %s24, 1
      %p158 = por %p156, %p157
      %p160 = scmp.ne.s32.totalorder %s145, %s159
      %p161 = scmp.eq.s32.totalorder %s24, 0
      %p162 = por %p160, %p161
      %s163 = ssub.s32 %s25, %s37
      %p164 = scmp.eq.s32.totalorder %s163, 0
      %s166 = sadd.s32 %s165, 1
      %s167 = scalar_select %p164, %s165, %s166
      %p170 = pneg %p164
      %p171 = scmp.eq.s32.totalorder %s18, 1
      %p172 = por %p170, %p171
      %p173 = scmp.ne.s32.totalorder %s165, %s168
      %p174 = scmp.eq.s32.totalorder %s18, 0
      %p175 = por %p173, %p174
      %p176 = scmp.ne.s32.totalorder %s165, %s168
      %p177 = scmp.eq.s32.totalorder %s23, 1
      %p178 = por %p176, %p177
      %p179 = scmp.ne.s32.totalorder %s168, %s169
      %p180 = scmp.eq.s32.totalorder %s23, 0
      %p181 = por %p179, %p180
      %p182 = scmp.ne.s32.totalorder %s168, %s169
      %p183 = scmp.eq.s32.totalorder %s24, 1
      %p184 = por %p182, %p183
      %p186 = scmp.ne.s32.totalorder %s169, %s185
      %p187 = scmp.eq.s32.totalorder %s24, 0
      %p188 = por %p186, %p187
      %p189 = scmp.le.s32.totalorder 1, %s18
      %p190 = scmp.lt.s32.totalorder %s18, 3
      %p191 = pnand %p189, %p190
      %p192 = pneg %p191
      // Predicated region
      $region9: #{tpu_custom_call.1} parent=5 // pred_check
        _
      $region10: #{tpu_custom_call.1} parent=5 // pred_check_branch
        %194 = sbr.rel (%p191) target = $region12
      $region11: #{tpu_custom_call.1} parent=5 // pred_region
        %s195 = ssub.s32 %s18, 1
        // Predicated region
        $region13: #{tpu_custom_call.1} parent=11 // pred_check
          %p196 = pneg %p82
        $region14: #{tpu_custom_call.1} parent=11 // pred_check_branch
          %198 = sbr.rel (%p196) target = $region16
        $region15: #{tpu_custom_call.1} parent=11 // pred_region
          %s199 = smul.u32 2, %s28
          %s201 = ssub.s32 2048, 2048
          %202 = vsyncadd [#allocation7], %s201
          %s203 = smul.addr %s199, 64
          %s204 = scalar_lea.hbm %s1, %s203
          %s205 = sshll.u32 [#allocation6], 4
          %s206 = int_to_ptr.vmem [resolvable:$true] %s205
          %211 = dma.hbm_to_vmem [thread:$0]  %s204, 2048, %s206, [#allocation7], 128, 128, 8
        $region16: #{tpu_custom_call.1} parent=11 // pred_fallthru
          _
        // Predicated region
        $region17: #{tpu_custom_call.1} parent=11 // pred_check
          %p212 = pneg %p108
        $region18: #{tpu_custom_call.1} parent=11 // pred_check_branch
          %214 = sbr.rel (%p212) target = $region20
        $region19: #{tpu_custom_call.1} parent=11 // pred_region
          %s215 = smul.u32 2, %s28
          %p216 = scmp.lt.s32.totalorder %s215, 1
          %s217 = scalar_select %p216, %s215, 1
          %s218 = scalar_lea.vmem %s2, %s217
          %s219 = smul.u32 2, %s28
        $region20: #{tpu_custom_call.1} parent=11 // pred_fallthru
          _
        // Predicated region
        $region21: #{tpu_custom_call.1} parent=11 // pred_check
          %p220 = pneg %p134
        $region22: #{tpu_custom_call.1} parent=11 // pred_check_branch
          %222 = sbr.rel (%p220) target = $region24
        $region23: #{tpu_custom_call.1} parent=11 // pred_region
          %s223 = smul.u32 32, %s28
          %s225 = ssub.s32 4096, 4096
          %226 = vsyncadd [#allocation7], %s225
          %s227 = smul.addr %s223, 2
          %s228 = smul.addr %s227, 64
          %s229 = scalar_lea.hbm %s3, %s228
          %s230 = sshll.u32 [#allocation8], 4
          %s231 = int_to_ptr.vmem [resolvable:$true] %s230
          %236 = dma.hbm_to_vmem [thread:$0]  %s229, 4096, %s231, [#allocation7], 128, 128, 8
        $region24: #{tpu_custom_call.1} parent=11 // pred_fallthru
          _
        // Predicated region
        $region25: #{tpu_custom_call.1} parent=11 // pred_check
          %p237 = pneg %p155
        $region26: #{tpu_custom_call.1} parent=11 // pred_check_branch
          %239 = sbr.rel (%p237) target = $region28
        $region27: #{tpu_custom_call.1} parent=11 // pred_region
          _
        $region28: #{tpu_custom_call.1} parent=11 // pred_fallthru
          _
      $region12: #{tpu_custom_call.1} parent=5 // pred_fallthru
        _
      %p240 = scmp.lt.s32.totalorder %s18, 2
      // Predicated region
      $region29: #{tpu_custom_call.1} parent=5 // pred_check
        %p241 = pneg %p240
      $region30: #{tpu_custom_call.1} parent=5 // pred_check_branch
        %243 = sbr.rel (%p241) target = $region32
      $region31: #{tpu_custom_call.1} parent=5 // pred_region
        // Predicated region
        $region33: #{tpu_custom_call.1} parent=31 // pred_check
          %p244 = pneg %p50
        $region34: #{tpu_custom_call.1} parent=31 // pred_check_branch
          %246 = sbr.rel (%p244) target = $region36
        $region35: #{tpu_custom_call.1} parent=31 // pred_region
          %s247 = sand.u32 %s40, 1
          %s248 = scalar_lea.sflag [#allocation4], %s247
          %s249 = sand.u32 %s40, 1
          %s250 = smul.addr %s249, 16
          %s251 = scalar_lea.vmem [#allocation3], %s250
          %s252 = smul.u32 2, %s25
          %s254 = ssub.s32 256, 256
          %255 = vsyncadd %s248, %s254
          %s256 = smul.addr %s252, 128
          %s257 = scalar_lea.hbm %s0, %s256
          %s258 = sshll.u32 %s251, 4
          %s259 = int_to_ptr.vmem [resolvable:$true] %s258
          %264 = dma.hbm_to_vmem [thread:$0]  %s257, 256, %s259, %s248, 128, 128, 8
        $region36: #{tpu_custom_call.1} parent=31 // pred_fallthru
          _
      $region32: #{tpu_custom_call.1} parent=5 // pred_fallthru
        _
      %p265 = scmp.le.s32.totalorder 1, %s18
      %p266 = scmp.lt.s32.totalorder %s18, 3
      %p267 = pnand %p265, %p266
      %p268 = pneg %p267
      // Predicated region
      $region37: #{tpu_custom_call.1} parent=5 // pred_check
        _
      $region38: #{tpu_custom_call.1} parent=5 // pred_check_branch
        %270 = sbr.rel (%p267) target = $region40
      $region39: #{tpu_custom_call.1} parent=5 // pred_region
        %s271 = ssub.s32 %s18, 1
        %s272 = sand.u32 %s43, 1
        %s273 = scalar_lea.sflag [#allocation4], %s272
        %s274 = sand.u32 %s43, 1
        %s275 = smul.addr %s274, 16
        %s276 = scalar_lea.vmem [#allocation3], %s275
        // Predicated region
        $region41: #{tpu_custom_call.1} parent=39 // pred_check
          %p277 = pneg %p56
        $region42: #{tpu_custom_call.1} parent=39 // pred_check_branch
          %279 = sbr.rel (%p277) target = $region44
        $region43: #{tpu_custom_call.1} parent=39 // pred_region
          %280 = dma.done %s273, 256
        $region44: #{tpu_custom_call.1} parent=39 // pred_fallthru
          _
        // Predicated region
        $region45: #{tpu_custom_call.1} parent=39 // pred_check
          %p281 = pneg %p82
        $region46: #{tpu_custom_call.1} parent=39 // pred_check_branch
          %283 = sbr.rel (%p281) target = $region48
        $region47: #{tpu_custom_call.1} parent=39 // pred_region
          %284 = dma.done [#allocation7], 2048
        $region48: #{tpu_custom_call.1} parent=39 // pred_fallthru
          _
        // Predicated region
        $region49: #{tpu_custom_call.1} parent=39 // pred_check
          %p285 = pneg %p134
        $region50: #{tpu_custom_call.1} parent=39 // pred_check_branch
          %287 = sbr.rel (%p285) target = $region52
        $region51: #{tpu_custom_call.1} parent=39 // pred_region
          %288 = dma.done [#allocation7], 4096
        $region52: #{tpu_custom_call.1} parent=39 // pred_fallthru
          _
        %s289 = sand.u32 %s43, 1
        %s290 = scalar_lea.sflag [#allocation4], %s289
        %s291 = sand.u32 %s43, 1
        %s292 = smul.addr %s291, 16
        %s293 = scalar_lea.vmem [#allocation3], %s292
        %p294 = pneg %p56
        %p295 = pneg %p53
        %p296 = pneg %p82
        %p297 = pneg %p79
        %s298 = smul.u32 2, %s28
        %p299 = scmp.lt.s32.totalorder %s298, 1
        %s300 = scalar_select %p299, %s298, 1
        %s301 = scalar_lea.vmem %s2, %s300
        %p302 = pneg %p108
        %p303 = pneg %p105
        %p304 = pneg %p134
        %p305 = pneg %p131
        %p306 = pneg %p155
        %p307 = pneg %p152
        %p308 = pneg %p181
        %p309 = pneg %p178
        %s310 = sand.u32 %s168, 1
        %s311 = scalar_lea.sflag [#allocation5], %s310
        %s312 = sand.u32 %s168, 1
        %s313 = smul.addr %s312, 32
        %s314 = scalar_lea.vmem [#allocation9], %s313
        %s315 = smul.u32 2, %s27
        %s316 = smul.u32 2, %s28
        %s317 = smul.u32 2, %s28
        %p318 = scmp.lt.s32.totalorder %s317, 1
        %s319 = scalar_select %p318, %s317, 1
        %s320 = scalar_lea.vmem %s2, %s319
        %s321 = smul.u32 2, %s28
        %s322 = smul.u32 32, %s28
        %s323 = smul.u32 2, %s27
        %p329 = scmp.eq.s32.totalorder %s28, 0
        // Predicated region
        $region53: #{tpu_custom_call.1} parent=39 // pred_check
          %p330 = pneg %p329
        $region54: #{tpu_custom_call.1} parent=39 // pred_check_branch
          %332 = sbr.rel (%p330) target = $region56
        $region55: #{tpu_custom_call.1} parent=39 // pred_region
          %333 = vst [vmem:[#allocation2] sm:$0xff] 0.0
          %334 = vst [vmem:[#allocation2 + $0x8] sm:$0xff] 0.0
          %335 = vst [vmem:[#allocation2 + $0x10] sm:$0xff] 0.0
          %336 = vst [vmem:[#allocation2 + $0x18] sm:$0xff] 0.0
        $region56: #{tpu_custom_call.1} parent=39 // pred_fallthru
          _
        %v337 = vld [vmem:[%s276] sm:$0xff]
        %v338 = vld [vmem:[%s276 + $0x8] sm:$0xff]
        %v339 = vpack.c.bf16 %v338, %v337
        %v340 = vld [vmem:[#allocation6] sm:$0xff]
        %v341 = vld [vmem:[#allocation6 + $0x8] sm:$0xff]
        %v342 = vld [vmem:[#allocation6 + $0x10] sm:$0xff]
        %v343 = vld [vmem:[#allocation6 + $0x18] sm:$0xff]
        %v344 = vld [vmem:[#allocation6 + $0x20] sm:$0xff]
        %v345 = vld [vmem:[#allocation6 + $0x28] sm:$0xff]
        %v346 = vld [vmem:[#allocation6 + $0x30] sm:$0xff]
        %v347 = vld [vmem:[#allocation6 + $0x38] sm:$0xff]
        %v348 = vld [vmem:[#allocation6 + $0x40] sm:$0xff]
        %v349 = vld [vmem:[#allocation6 + $0x48] sm:$0xff]
        %v350 = vld [vmem:[#allocation6 + $0x50] sm:$0xff]
        %v351 = vld [vmem:[#allocation6 + $0x58] sm:$0xff]
        %v352 = vld [vmem:[#allocation6 + $0x60] sm:$0xff]
        %v353 = vld [vmem:[#allocation6 + $0x68] sm:$0xff]
        %v354 = vld [vmem:[#allocation6 + $0x70] sm:$0xff]
        %v355 = vld [vmem:[#allocation6 + $0x78] sm:$0xff]
        %v356 = vld [vmem:[%s320] sm:$0x3]
        %v358 = vlaneseq
        %v359 = vshrl.u32 %v358, 7
        %v360 = vsub.s32 0, %v359
        %v361 = vrot.slane %v356, %v360
        %v362 = vlaneseq
        %v363 = vshrl.u32 %v362, 7
        %v364 = vsub.s32 1, %v363
        %v365 = vrot.slane %v356, %v364
        %v384 = vunpack.c.l.b16 %v340
        %v385 = vunpack.c.h.b16 %v340
        %v386 = vunpack.c.l.b16 %v341
        %v387 = vunpack.c.h.b16 %v341
        %v388 = vunpack.c.l.b16 %v342
        %v389 = vunpack.c.h.b16 %v342
        %v390 = vunpack.c.l.b16 %v343
        %v391 = vunpack.c.h.b16 %v343
        %v392 = vunpack.c.l.b16 %v344
        %v393 = vunpack.c.h.b16 %v344
        %v394 = vunpack.c.l.b16 %v345
        %v395 = vunpack.c.h.b16 %v345
        %v396 = vunpack.c.l.b16 %v346
        %v397 = vunpack.c.h.b16 %v346
        %v398 = vunpack.c.l.b16 %v347
        %v399 = vunpack.c.h.b16 %v347
        %v400 = vunpack.c.l.b16 %v348
        %v401 = vunpack.c.h.b16 %v348
        %v402 = vunpack.c.l.b16 %v349
        %v403 = vunpack.c.h.b16 %v349
        %v404 = vunpack.c.l.b16 %v350
        %v405 = vunpack.c.h.b16 %v350
        %v406 = vunpack.c.l.b16 %v351
        %v407 = vunpack.c.h.b16 %v351
        %v408 = vunpack.c.l.b16 %v352
        %v409 = vunpack.c.h.b16 %v352
        %v410 = vunpack.c.l.b16 %v353
        %v411 = vunpack.c.h.b16 %v353
        %v412 = vunpack.c.l.b16 %v354
        %v413 = vunpack.c.h.b16 %v354
        %v414 = vunpack.c.l.b16 %v355
        %v415 = vunpack.c.h.b16 %v355
        %v416 = vpack.c.b16 %v386, %v384
        %v417 = vpack.c.b16 %v387, %v385
        %v418 = vpack.c.b16 %v390, %v388
        %v419 = vpack.c.b16 %v391, %v389
        %v420 = vpack.c.b16 %v394, %v392
        %v421 = vpack.c.b16 %v395, %v393
        %v422 = vpack.c.b16 %v398, %v396
        %v423 = vpack.c.b16 %v399, %v397
        %v424 = vpack.c.b16 %v402, %v400
        %v425 = vpack.c.b16 %v403, %v401
        %v426 = vpack.c.b16 %v406, %v404
        %v427 = vpack.c.b16 %v407, %v405
        %v428 = vpack.c.b16 %v410, %v408
        %v429 = vpack.c.b16 %v411, %v409
        %v430 = vpack.c.b16 %v414, %v412
        %v431 = vpack.c.b16 %v415, %v413
        %448 = vmatprep.subr.bf16.mxu0 %v431
        %449 = vmatpush1.bf16.msra.mxu0 %v430
        %450 = vmatprep.subr.bf16.mxu0 %v429
        %451 = vmatpush1.bf16.msra.mxu0 %v428
        %452 = vmatprep.subr.bf16.mxu0 %v427
        %453 = vmatpush1.bf16.msra.mxu0 %v426
        %454 = vmatprep.subr.bf16.mxu0 %v425
        %455 = vmatpush1.bf16.msra.mxu0 %v424
        %456 = vmatprep.subr.bf16.mxu0 %v423
        %457 = vmatpush1.bf16.msra.mxu0 %v422
        %458 = vmatprep.subr.bf16.mxu0 %v421
        %459 = vmatpush1.bf16.msra.mxu0 %v420
        %460 = vmatprep.subr.bf16.mxu0 %v419
        %461 = vmatpush1.bf16.msra.mxu0 %v418
        %462 = vmatprep.subr.bf16.mxu0 %v417
        %463 = vmatpush1.bf16.msra.mxu0 %v416
        %464 = vmatprep.subr.bf16.mxu0 0
        %465 = vmatpush2.bf16.msra.mxu0 0
        %466 = vmatprep.subr.bf16.mxu0 0
        %467 = vmatpush2.bf16.msra.mxu0 0
        %468 = vmatprep.subr.bf16.mxu0 0
        %469 = vmatpush2.bf16.msra.mxu0 0
        %470 = vmatprep.subr.bf16.mxu0 0
        %471 = vmatpush2.bf16.msra.mxu0 0
        %472 = vmatprep.subr.bf16.mxu0 0
        %473 = vmatpush2.bf16.msra.mxu0 0
        %474 = vmatprep.subr.bf16.mxu0 0
        %475 = vmatpush2.bf16.msra.mxu0 0
        %476 = vmatprep.subr.bf16.mxu0 0
        %477 = vmatpush2.bf16.msra.mxu0 0
        %478 = vmatprep.subr.bf16.mxu0 0
        %479 = vmatpush2.bf16.msra.mxu0 0
        %480 = vmatprep.mubr.bf16.mxu0 0
        %481 = vmatmul.mubr.bf16.gmra.mxu0 %v339
        %v482 = vpop.f32.mrf.mxu0
        %v483 = vadd.f32 %v361, %v482
        %v484 = vpop.f32.mrf.mxu0
        %v485 = vadd.f32 %v365, %v484
        %v486 = vpop.f32.mrf.mxu0
        %v487 = vadd.f32 %v361, %v486
        %v488 = vpop.f32.mrf.mxu0
        %v489 = vadd.f32 %v365, %v488
        %490 = vdwg.mxu0
        %v491 = vpack.c.bf16 %v487, %v483
        %v492 = vpack.c.bf16 %v489, %v485
        %v493 = vmul.bf16 %v491, 1056980736
        %v494 = vmul.bf16 %v492, 1056980736
        %v495 = vmul.bf16 %v491, 1027030327
        %v496 = vmul.bf16 %v492, 1027030327
        %v497 = vmul.bf16 %v495, %v491
        %v498 = vmul.bf16 %v496, %v492
        %v499 = vmul.bf16 %v497, %v491
        %v500 = vmul.bf16 %v498, %v492
        %v501 = vadd.bf16 %v491, %v499
        %v502 = vadd.bf16 %v492, %v500
        %v503 = vmul.bf16 %v501, 1061961548
        %v504 = vmul.bf16 %v502, 1061961548
        %v505 = vtanh.bf16.pop %v503
        %v506 = vtanh.bf16.pop %v504
        %v507 = vadd.bf16 %v505, 1065369472
        %v508 = vadd.bf16 %v506, 1065369472
        %v509 = vmul.bf16 %v493, %v507
        %v510 = vmul.bf16 %v494, %v508
        %v511 = vld [vmem:[#allocation2] sm:$0xff]
        %v512 = vld [vmem:[#allocation2 + $0x8] sm:$0xff]
        %v513 = vld [vmem:[#allocation2 + $0x10] sm:$0xff]
        %v514 = vld [vmem:[#allocation2 + $0x18] sm:$0xff]
        %v515 = vld [vmem:[#allocation8] sm:$0xff]
        %v516 = vld [vmem:[#allocation8 + $0x8] sm:$0xff]
        %v517 = vld [vmem:[#allocation8 + $0x10] sm:$0xff]
        %v518 = vld [vmem:[#allocation8 + $0x18] sm:$0xff]
        %v519 = vld [vmem:[#allocation8 + $0x20] sm:$0xff]
        %v520 = vld [vmem:[#allocation8 + $0x28] sm:$0xff]
        %v521 = vld [vmem:[#allocation8 + $0x30] sm:$0xff]
        %v522 = vld [vmem:[#allocation8 + $0x38] sm:$0xff]
        %v523 = vld [vmem:[#allocation8 + $0x40] sm:$0xff]
        %v524 = vld [vmem:[#allocation8 + $0x48] sm:$0xff]
        %v525 = vld [vmem:[#allocation8 + $0x50] sm:$0xff]
        %v526 = vld [vmem:[#allocation8 + $0x58] sm:$0xff]
        %v527 = vld [vmem:[#allocation8 + $0x60] sm:$0xff]
        %v528 = vld [vmem:[#allocation8 + $0x68] sm:$0xff]
        %v529 = vld [vmem:[#allocation8 + $0x70] sm:$0xff]
        %v530 = vld [vmem:[#allocation8 + $0x78] sm:$0xff]
        %v531 = vld [vmem:[#allocation8 + $0x80] sm:$0xff]
        %v532 = vld [vmem:[#allocation8 + $0x88] sm:$0xff]
        %v533 = vld [vmem:[#allocation8 + $0x90] sm:$0xff]
        %v534 = vld [vmem:[#allocation8 + $0x98] sm:$0xff]
        %v535 = vld [vmem:[#allocation8 + $0xa0] sm:$0xff]
        %v536 = vld [vmem:[#allocation8 + $0xa8] sm:$0xff]
        %v537 = vld [vmem:[#allocation8 + $0xb0] sm:$0xff]
        %v538 = vld [vmem:[#allocation8 + $0xb8] sm:$0xff]
        %v539 = vld [vmem:[#allocation8 + $0xc0] sm:$0xff]
        %v540 = vld [vmem:[#allocation8 + $0xc8] sm:$0xff]
        %v541 = vld [vmem:[#allocation8 + $0xd0] sm:$0xff]
        %v542 = vld [vmem:[#allocation8 + $0xd8] sm:$0xff]
        %v543 = vld [vmem:[#allocation8 + $0xe0] sm:$0xff]
        %v544 = vld [vmem:[#allocation8 + $0xe8] sm:$0xff]
        %v545 = vld [vmem:[#allocation8 + $0xf0] sm:$0xff]
        %v546 = vld [vmem:[#allocation8 + $0xf8] sm:$0xff]
        %v579 = vunpack.c.l.b16 %v515
        %v580 = vunpack.c.h.b16 %v515
        %v581 = vunpack.c.l.b16 %v516
        %v582 = vunpack.c.h.b16 %v516
        %v583 = vunpack.c.l.b16 %v517
        %v584 = vunpack.c.h.b16 %v517
        %v585 = vunpack.c.l.b16 %v518
        %v586 = vunpack.c.h.b16 %v518
        %v587 = vunpack.c.l.b16 %v519
        %v588 = vunpack.c.h.b16 %v519
        %v589 = vunpack.c.l.b16 %v520
        %v590 = vunpack.c.h.b16 %v520
        %v591 = vunpack.c.l.b16 %v521
        %v592 = vunpack.c.h.b16 %v521
        %v593 = vunpack.c.l.b16 %v522
        %v594 = vunpack.c.h.b16 %v522
        %v595 = vunpack.c.l.b16 %v523
        %v596 = vunpack.c.h.b16 %v523
        %v597 = vunpack.c.l.b16 %v524
        %v598 = vunpack.c.h.b16 %v524
        %v599 = vunpack.c.l.b16 %v525
        %v600 = vunpack.c.h.b16 %v525
        %v601 = vunpack.c.l.b16 %v526
        %v602 = vunpack.c.h.b16 %v526
        %v603 = vunpack.c.l.b16 %v527
        %v604 = vunpack.c.h.b16 %v527
        %v605 = vunpack.c.l.b16 %v528
        %v606 = vunpack.c.h.b16 %v528
        %v607 = vunpack.c.l.b16 %v529
        %v608 = vunpack.c.h.b16 %v529
        %v609 = vunpack.c.l.b16 %v530
        %v610 = vunpack.c.h.b16 %v530
        %v611 = vunpack.c.l.b16 %v531
        %v612 = vunpack.c.h.b16 %v531
        %v613 = vunpack.c.l.b16 %v532
        %v614 = vunpack.c.h.b16 %v532
        %v615 = vunpack.c.l.b16 %v533
        %v616 = vunpack.c.h.b16 %v533
        %v617 = vunpack.c.l.b16 %v534
        %v618 = vunpack.c.h.b16 %v534
        %v619 = vunpack.c.l.b16 %v535
        %v620 = vunpack.c.h.b16 %v535
        %v621 = vunpack.c.l.b16 %v536
        %v622 = vunpack.c.h.b16 %v536
        %v623 = vunpack.c.l.b16 %v537
        %v624 = vunpack.c.h.b16 %v537
        %v625 = vunpack.c.l.b16 %v538
        %v626 = vunpack.c.h.b16 %v538
        %v627 = vunpack.c.l.b16 %v539
        %v628 = vunpack.c.h.b16 %v539
        %v629 = vunpack.c.l.b16 %v540
        %v630 = vunpack.c.h.b16 %v540
        %v631 = vunpack.c.l.b16 %v541
        %v632 = vunpack.c.h.b16 %v541
        %v633 = vunpack.c.l.b16 %v542
        %v634 = vunpack.c.h.b16 %v542
        %v635 = vunpack.c.l.b16 %v543
        %v636 = vunpack.c.h.b16 %v543
        %v637 = vunpack.c.l.b16 %v544
        %v638 = vunpack.c.h.b16 %v544
        %v639 = vunpack.c.l.b16 %v545
        %v640 = vunpack.c.h.b16 %v545
        %v641 = vunpack.c.l.b16 %v546
        %v642 = vunpack.c.h.b16 %v546
        %v643 = vpack.c.b16 %v581, %v579
        %v644 = vpack.c.b16 %v582, %v580
        %v645 = vpack.c.b16 %v585, %v583
        %v646 = vpack.c.b16 %v586, %v584
        %v647 = vpack.c.b16 %v589, %v587
        %v648 = vpack.c.b16 %v590, %v588
        %v649 = vpack.c.b16 %v593, %v591
        %v650 = vpack.c.b16 %v594, %v592
        %v651 = vpack.c.b16 %v597, %v595
        %v652 = vpack.c.b16 %v598, %v596
        %v653 = vpack.c.b16 %v601, %v599
        %v654 = vpack.c.b16 %v602, %v600
        %v655 = vpack.c.b16 %v605, %v603
        %v656 = vpack.c.b16 %v606, %v604
        %v657 = vpack.c.b16 %v609, %v607
        %v658 = vpack.c.b16 %v610, %v608
        %v659 = vpack.c.b16 %v613, %v611
        %v660 = vpack.c.b16 %v614, %v612
        %v661 = vpack.c.b16 %v617, %v615
        %v662 = vpack.c.b16 %v618, %v616
        %v663 = vpack.c.b16 %v621, %v619
        %v664 = vpack.c.b16 %v622, %v620
        %v665 = vpack.c.b16 %v625, %v623
        %v666 = vpack.c.b16 %v626, %v624
        %v667 = vpack.c.b16 %v629, %v627
        %v668 = vpack.c.b16 %v630, %v628
        %v669 = vpack.c.b16 %v633, %v631
        %v670 = vpack.c.b16 %v634, %v632
        %v671 = vpack.c.b16 %v637, %v635
        %v672 = vpack.c.b16 %v638, %v636
        %v673 = vpack.c.b16 %v641, %v639
        %v674 = vpack.c.b16 %v642, %v640
        %707 = vmatprep.subr.bf16.mxu0 %v658
        %708 = vmatpush1.bf16.msra.mxu0 %v657
        %709 = vmatprep.subr.bf16.mxu0 %v656
        %710 = vmatpush1.bf16.msra.mxu0 %v655
        %711 = vmatprep.subr.bf16.mxu0 %v654
        %712 = vmatpush1.bf16.msra.mxu0 %v653
        %713 = vmatprep.subr.bf16.mxu0 %v652
        %714 = vmatpush1.bf16.msra.mxu0 %v651
        %715 = vmatprep.subr.bf16.mxu0 %v650
        %716 = vmatpush1.bf16.msra.mxu0 %v649
        %717 = vmatprep.subr.bf16.mxu0 %v648
        %718 = vmatpush1.bf16.msra.mxu0 %v647
        %719 = vmatprep.subr.bf16.mxu0 %v646
        %720 = vmatpush1.bf16.msra.mxu0 %v645
        %721 = vmatprep.subr.bf16.mxu0 %v644
        %722 = vmatpush1.bf16.msra.mxu0 %v643
        %723 = vmatprep.subr.bf16.mxu0 %v674
        %724 = vmatpush2.bf16.msra.mxu0 %v673
        %725 = vmatprep.subr.bf16.mxu0 %v672
        %726 = vmatpush2.bf16.msra.mxu0 %v671
        %727 = vmatprep.subr.bf16.mxu0 %v670
        %728 = vmatpush2.bf16.msra.mxu0 %v669
        %729 = vmatprep.subr.bf16.mxu0 %v668
        %730 = vmatpush2.bf16.msra.mxu0 %v667
        %731 = vmatprep.subr.bf16.mxu0 %v666
        %732 = vmatpush2.bf16.msra.mxu0 %v665
        %733 = vmatprep.subr.bf16.mxu0 %v664
        %734 = vmatpush2.bf16.msra.mxu0 %v663
        %735 = vmatprep.subr.bf16.mxu0 %v662
        %736 = vmatpush2.bf16.msra.mxu0 %v661
        %737 = vmatprep.subr.bf16.mxu0 %v660
        %738 = vmatpush2.bf16.msra.mxu0 %v659
        %739 = vmatprep.mubr.bf16.mxu0 %v510
        %740 = vmatmul.mubr.bf16.gmra.mxu0 %v509
        %v741 = vpop.f32.mrf.mxu0
        %v742 = vadd.f32 0.0, %v741
        %v743 = vpop.f32.mrf.mxu0
        %v744 = vadd.f32 0.0, %v743
        %v745 = vpop.f32.mrf.mxu0
        %v746 = vadd.f32 0.0, %v745
        %v747 = vpop.f32.mrf.mxu0
        %v748 = vadd.f32 0.0, %v747
        %749 = vdwg.mxu0
        %v750 = vadd.f32 %v511, %v742
        %v751 = vadd.f32 %v512, %v744
        %v752 = vadd.f32 %v513, %v746
        %v753 = vadd.f32 %v514, %v748
        %754 = vst [vmem:[#allocation2] sm:$0xff] %v750
        %755 = vst [vmem:[#allocation2 + $0x8] sm:$0xff] %v751
        %756 = vst [vmem:[#allocation2 + $0x10] sm:$0xff] %v752
        %757 = vst [vmem:[#allocation2 + $0x18] sm:$0xff] %v753
        // Predicated region
        $region57: #{tpu_custom_call.1} parent=39 // pred_check
          %p758 = pneg %p329
        $region58: #{tpu_custom_call.1} parent=39 // pred_check_branch
          %760 = sbr.rel (%p758) target = $region60
        $region59: #{tpu_custom_call.1} parent=39 // pred_region
          %v761 = vld [vmem:[#allocation2] sm:$0xff]
          %v762 = vld [vmem:[#allocation2 + $0x8] sm:$0xff]
          %v763 = vld [vmem:[#allocation2 + $0x10] sm:$0xff]
          %v764 = vld [vmem:[#allocation2 + $0x18] sm:$0xff]
          %v765 = vld [vmem:[%s4] sm:$0x3]
          %v767 = vlaneseq
          %v768 = vshrl.u32 %v767, 7
          %v769 = vsub.s32 0, %v768
          %v770 = vrot.slane %v765, %v769
          %v771 = vlaneseq
          %v772 = vshrl.u32 %v771, 7
          %v773 = vsub.s32 1, %v772
          %v774 = vrot.slane %v765, %v773
          %v777 = vadd.f32 %v761, %v770
          %v778 = vadd.f32 %v762, %v774
          %v779 = vadd.f32 %v763, %v770
          %v780 = vadd.f32 %v764, %v774
          %781 = vst [vmem:[%s314] sm:$0xff] %v777
          %782 = vst [vmem:[%s314 + $0x8] sm:$0xff] %v778
          %783 = vst [vmem:[%s314 + $0x10] sm:$0xff] %v779
          %784 = vst [vmem:[%s314 + $0x18] sm:$0xff] %v780
        $region60: #{tpu_custom_call.1} parent=39 // pred_fallthru
          _
        %s785 = sand.u32 %s168, 1
        %s786 = scalar_lea.sflag [#allocation5], %s785
        %s787 = sand.u32 %s168, 1
        %s788 = smul.addr %s787, 32
        %s789 = scalar_lea.vmem [#allocation9], %s788
        // Predicated region
        $region61: #{tpu_custom_call.1} parent=39 // pred_check
          %p790 = pneg %p178
        $region62: #{tpu_custom_call.1} parent=39 // pred_check_branch
          %792 = sbr.rel (%p790) target = $region64
        $region63: #{tpu_custom_call.1} parent=39 // pred_region
          %s793 = smul.u32 2, %s27
          %s795 = ssub.s32 512, 512
          %796 = vsyncadd %s786, %s795
          %s797 = smul.addr %s793, 2
          %s798 = smul.addr %s797, 128
          %s799 = scalar_lea.hbm %s5, %s798
          %s800 = sshll.u32 %s789, 4
          %s801 = int_to_ptr.vmem [resolvable:$true] %s800
          %806 = dma.vmem_to_hbm [thread:$0]  %s801, 512, %s799, %s786, 256, 256, 16
        $region64: #{tpu_custom_call.1} parent=39 // pred_fallthru
          _
      $region40: #{tpu_custom_call.1} parent=5 // pred_fallthru
        _
      %p807 = scmp.le.s32.totalorder 2, %s18
      // Predicated region
      $region65: #{tpu_custom_call.1} parent=5 // pred_check
        %p808 = pneg %p807
      $region66: #{tpu_custom_call.1} parent=5 // pred_check_branch
        %810 = sbr.rel (%p808) target = $region68
      $region67: #{tpu_custom_call.1} parent=5 // pred_region
        %s811 = ssub.s32 %s18, 2
        // Predicated region
        $region69: #{tpu_custom_call.1} parent=67 // pred_check
          %p812 = pneg %p184
        $region70: #{tpu_custom_call.1} parent=67 // pred_check_branch
          %814 = sbr.rel (%p812) target = $region72
        $region71: #{tpu_custom_call.1} parent=67 // pred_region
          %s815 = sand.u32 %s169, 1
          %s816 = scalar_lea.sflag [#allocation5], %s815
          %s817 = sand.u32 %s169, 1
          %s818 = smul.addr %s817, 32
          %s819 = scalar_lea.vmem [#allocation9], %s818
          %820 = dma.done %s816, 512
        $region72: #{tpu_custom_call.1} parent=67 // pred_fallthru
          _
      $region68: #{tpu_custom_call.1} parent=5 // pred_fallthru
        _
    $region6: #{tpu_custom_call.1} parent=1 // loop_footer
      %s22 = sadd.s32 1, %s18
    $region7: #{tpu_custom_call.1} parent=1 // loop_footer_branch
      %17 = sbr.rel target = $region3
    $region8: #{tpu_custom_call.1} parent=1 // loop_exit
      _
    %821 = vsyncpa [#allocation4], 1
    %s822 = scalar_lea.sflag [#allocation4], 1
    %823 = vsyncpa %s822, 1
    %824 = vsyncpa [#allocation7], 1
    %825 = vsyncpa [#allocation5], 1
    %s826 = scalar_lea.sflag [#allocation5], 1
    %827 = vsyncpa %s826, 1

</llo_original>
